<compile_context>
chip_gen: v6e
topology: v6e:2x2x1
jax: 0.10.0
libtpu: 0.0.40
codegen_flags: <defaults>
</compile_context>

<pallas_src>
import jax
import jax.numpy as jnp
from jax.experimental import pallas as pl
from jax.experimental.pallas import tpu as pltpu

EPS = 1e-5
LANES = 128  # lane-dense padding width for the tiny vectors / output


def inverse_model_kernel(old_ref, new_ref, w1_ref, w2_ref, w3_ref, vec_ref, o_ref):
    """Fused InverseModel forward (post feature extraction).

    old_ref, new_ref : (B, F)       extracted feature tensors
    w1_ref           : (2F, H1)     hidden1 weight, (in, out) layout
    w2_ref           : (H1, H2)     hidden2 weight (bias dropped: inert before BN2)
    w3_ref           : (H2, LANES)  hidden3 weight zero-padded to 128 output lanes
    vec_ref          : (8, LANES)   packed vectors:
                          row 0/1: BN1 gamma (old half / new half)
                          row 2/3: BN1 beta  (old half / new half)
                          row 4  : b1,  row 5/6: BN2 gamma/beta,  row 7: b3 (padded)
    o_ref            : (B, LANES)   sigmoid(logits), lane-dense
    """
    B, F = old_ref.shape
    H1 = w1_ref.shape[1]
    H2 = w2_ref.shape[1]
    inv_n = 1.0 / B

    def batchnorm(x, gamma, beta):
        # Training-mode BN, single pass: mean = E[x], biased var = E[x^2] - mean^2.
        mean = jnp.sum(x, axis=0, keepdims=True) * inv_n
        ex2 = jnp.sum(x * x, axis=0, keepdims=True) * inv_n
        var = jnp.maximum(ex2 - mean * mean, 0.0)
        return (x - mean) * jax.lax.rsqrt(var + EPS) * gamma + beta

    # --- BatchNorm1d over x = cat(old, new): per-column stats split exactly ---
    xo = batchnorm(old_ref[...], vec_ref[0:1, :F], vec_ref[2:3, :F])
    xn = batchnorm(new_ref[...], vec_ref[1:2, :F], vec_ref[3:4, :F])

    # --- hidden1: relu(cat(xo, xn) @ W1 + b1) via split-W1 (no in-kernel concat) ---
    h1 = jnp.dot(xo, w1_ref[:F, :], preferred_element_type=jnp.float32)
    h1 = h1 + jnp.dot(xn, w1_ref[F:, :], preferred_element_type=jnp.float32)
    h1 = jnp.maximum(h1 + vec_ref[4:5, :H1], 0.0)

    # --- hidden2 (bias cancels inside training-mode BN2) -> BN2 -> relu ---
    z2 = jnp.dot(h1, w2_ref[...], preferred_element_type=jnp.float32)
    h2 = jnp.maximum(batchnorm(z2, vec_ref[5:6, :H2], vec_ref[6:7, :H2]), 0.0)

    # --- hidden3 + sigmoid, lane-dense 128-wide output store ---
    z3 = jnp.dot(h2, w3_ref[...], preferred_element_type=jnp.float32) + vec_ref[7:8, :]
    o_ref[...] = 1.0 / (1.0 + jnp.exp(-z3))


def pack_params(params):
    """Pack the module parameters into 4 lane-friendly kernel operands."""
    (bn1_g, bn1_b, w1, b1, w2, b2, bn2_g, bn2_b, w3, b3) = params
    del b2  # mathematically inert before training-mode BatchNorm2 -> eliminated
    D = w1.shape[0]
    F = D // 2
    out_dim = w3.shape[1]

    def row(v):
        v = v.reshape(-1).astype(jnp.float32)
        return jnp.pad(v, (0, LANES - v.shape[0]))

    vec = jnp.stack([
        row(bn1_g[:F]), row(bn1_g[F:]),   # BN1 gamma (old / new half)
        row(bn1_b[:F]), row(bn1_b[F:]),   # BN1 beta
        row(b1),                          # hidden1 bias
        row(bn2_g), row(bn2_b),           # BN2 gamma / beta
        row(b3),                          # hidden3 bias (zero padded to 128)
    ])                                    # (8, 128) == exactly one f32 vreg

    w3_pad = jnp.pad(w3.astype(jnp.float32), ((0, 0), (0, LANES - out_dim)))
    return w1.astype(jnp.float32), w2.astype(jnp.float32), w3_pad, vec


def inverse_model_forward(oldfeatures, newfeatures, params):
    out_dim = params[-1].shape[0]
    batch, feat = oldfeatures.shape
    w1, w2, w3_pad, vec = pack_params(params)
    D, H1 = w1.shape
    H2 = w2.shape[1]

    # Scheduler hint: 3 matmuls + BN/relu/sigmoid elementwise work.
    flops = int(2 * batch * (D * H1 + H1 * H2 + H2 * LANES)
                + 12 * batch * (D + H1 + H2 + LANES))
    transcendentals = int(batch * LANES + D + H2)          # sigmoid exps + BN rsqrts
    bytes_accessed = int(4 * (2 * batch * feat + w1.size + w2.size
                              + w3_pad.size + vec.size + batch * LANES))

    vspec = pl.BlockSpec(memory_space=pltpu.MemorySpace.VMEM)
    out = pl.pallas_call(
        inverse_model_kernel,
        out_shape=jax.ShapeDtypeStruct((batch, LANES), jnp.float32),
        in_specs=[vspec] * 6,
        out_specs=vspec,
        compiler_params=pltpu.CompilerParams(vmem_limit_bytes=32 * 1024 * 1024),
        cost_estimate=pl.CostEstimate(flops=flops,
                                      transcendentals=transcendentals,
                                      bytes_accessed=bytes_accessed),
    )(oldfeatures, newfeatures, w1, w2, w3_pad, vec)
    return out[:, :out_dim]


def init_params(key, feature_dim, hidden1, hidden2, out_dim):
    """PyTorch-style init (uniform +/- 1/sqrt(fan_in)); BN affine params randomized
    (instead of the trivial gamma=1/beta=0 defaults) to make the check meaningful."""
    D = 2 * feature_dim
    ks = jax.random.split(key, 10)

    def linear(kw, kb, fan_in, fan_out):
        bound = 1.0 / jnp.sqrt(jnp.float32(fan_in))
        w = jax.random.uniform(kw, (fan_in, fan_out), jnp.float32, -bound, bound)
        b = jax.random.uniform(kb, (fan_out,), jnp.float32, -bound, bound)
        return w, b

    w1, b1 = linear(ks[0], ks[1], D, hidden1)
    w2, b2 = linear(ks[2], ks[3], hidden1, hidden2)
    w3, b3 = linear(ks[4], ks[5], hidden2, out_dim)
    bn1_g = jax.random.uniform(ks[6], (D,), jnp.float32, 0.5, 1.5)
    bn1_b = jax.random.uniform(ks[7], (D,), jnp.float32, -0.5, 0.5)
    bn2_g = jax.random.uniform(ks[8], (hidden2,), jnp.float32, 0.5, 1.5)
    bn2_b = jax.random.uniform(ks[9], (hidden2,), jnp.float32, -0.5, 0.5)
    return (bn1_g, bn1_b, w1, b1, w2, b2, bn2_g, bn2_b, w3, b3)


def inverse_model_ref(oldfeatures, newfeatures, params):
    """Pure-JAX reference (keeps b2 to demonstrate its exact cancellation in BN2)."""
    (bn1_g, bn1_b, w1, b1, w2, b2, bn2_g, bn2_b, w3, b3) = params
    x = jnp.concatenate([oldfeatures, newfeatures], axis=-1)
    m1 = x.mean(0, keepdims=True)
    v1 = ((x - m1) ** 2).mean(0, keepdims=True)
    xn = (x - m1) / jnp.sqrt(v1 + EPS) * bn1_g + bn1_b
    h1 = jnp.maximum(xn @ w1 + b1, 0.0)
    z2 = h1 @ w2 + b2
    m2 = z2.mean(0, keepdims=True)
    v2 = ((z2 - m2) ** 2).mean(0, keepdims=True)
    h2 = jnp.maximum((z2 - m2) / jnp.sqrt(v2 + EPS) * bn2_g + bn2_b, 0.0)
    z3 = h2 @ w3 + b3
    return jax.nn.sigmoid(z3)


if __name__ == "__main__":
    # Small shapes consistent with the module: feature_outputDim=16 (inv_inputDim=32),
    # inv_hidden_size1=32, inv_hidden_size2=32, outputDim=8, batch=8.
    batch, feature_dim, inv_hidden1, inv_hidden2, out_dim = 8, 16, 32, 32, 8

    key = jax.random.PRNGKey(0)
    k_old, k_new, k_p = jax.random.split(key, 3)
    oldfeatures = jax.random.normal(k_old, (batch, feature_dim), jnp.float32)
    newfeatures = jax.random.normal(k_new, (batch, feature_dim), jnp.float32)
    params = init_params(k_p, feature_dim, inv_hidden1, inv_hidden2, out_dim)

    out = jax.block_until_ready(inverse_model_forward(oldfeatures, newfeatures, params))
    ref = inverse_model_ref(oldfeatures, newfeatures, params)

    assert out.shape == (batch, out_dim)
    assert jnp.allclose(out, ref, atol=1e-4, rtol=1e-4), float(jnp.max(jnp.abs(out - ref)))
    print("KERNEL_OK")
</pallas_src>

<mosaic_0001>
module attributes {stable_mosaic.version = 11 : i64} {
  func.func @inverse_model_kernel(%arg0: memref<8x16xf32, #tpu.memory_space<vmem>>, %arg1: memref<8x16xf32, #tpu.memory_space<vmem>>, %arg2: memref<32x32xf32, #tpu.memory_space<vmem>>, %arg3: memref<32x32xf32, #tpu.memory_space<vmem>>, %arg4: memref<32x128xf32, #tpu.memory_space<vmem>>, %arg5: memref<8x128xf32, #tpu.memory_space<vmem>>, %arg6: memref<8x128xf32, #tpu.memory_space<vmem>>) attributes {dimension_semantics = [], scalar_prefetch = 0 : i64, scratch_operands = 0 : i64, tpu.core_type = #tpu.core_type<tc>} {
    %c0 = arith.constant 0 : index
    %c0_0 = arith.constant 0 : index
    %0 = vector.load %arg0[%c0, %c0_0] : memref<8x16xf32, #tpu.memory_space<vmem>>, vector<8x16xf32>
    %c0_1 = arith.constant 0 : index
    %c0_2 = arith.constant 0 : index
    %1 = vector.load %arg5[%c0_1, %c0_2] : memref<8x128xf32, #tpu.memory_space<vmem>>, vector<1x16xf32>
    %c2 = arith.constant 2 : index
    %c0_3 = arith.constant 0 : index
    %2 = vector.load %arg5[%c2, %c0_3] : memref<8x128xf32, #tpu.memory_space<vmem>>, vector<1x16xf32>
    %cst = arith.constant dense<0.000000e+00> : vector<16xf32>
    %3 = vector.multi_reduction <add>, %0, %cst [0] : vector<8x16xf32> to vector<16xf32>
    %4 = vector.shape_cast %3 : vector<16xf32> to vector<1x16xf32>
    %cst_4 = arith.constant 1.250000e-01 : f32
    %5 = vector.broadcast %cst_4 : f32 to vector<1x16xf32>
    %6 = arith.mulf %4, %5 : vector<1x16xf32>
    %7 = arith.mulf %0, %0 : vector<8x16xf32>
    %cst_5 = arith.constant dense<0.000000e+00> : vector<16xf32>
    %8 = vector.multi_reduction <add>, %7, %cst_5 [0] : vector<8x16xf32> to vector<16xf32>
    %9 = vector.shape_cast %8 : vector<16xf32> to vector<1x16xf32>
    %cst_6 = arith.constant 1.250000e-01 : f32
    %10 = vector.broadcast %cst_6 : f32 to vector<1x16xf32>
    %11 = arith.mulf %9, %10 : vector<1x16xf32>
    %12 = arith.mulf %6, %6 : vector<1x16xf32>
    %13 = arith.subf %11, %12 : vector<1x16xf32>
    %cst_7 = arith.constant 0.000000e+00 : f32
    %14 = vector.broadcast %cst_7 : f32 to vector<1x16xf32>
    %15 = arith.maximumf %13, %14 : vector<1x16xf32>
    %16 = vector.broadcast %6 : vector<1x16xf32> to vector<8x16xf32>
    %17 = arith.subf %0, %16 : vector<8x16xf32>
    %cst_8 = arith.constant 9.99999974E-6 : f32
    %18 = vector.broadcast %cst_8 : f32 to vector<1x16xf32>
    %19 = arith.addf %15, %18 : vector<1x16xf32>
    %20 = math.rsqrt %19 : vector<1x16xf32>
    %21 = vector.broadcast %20 : vector<1x16xf32> to vector<8x16xf32>
    %22 = arith.mulf %17, %21 : vector<8x16xf32>
    %23 = vector.broadcast %1 : vector<1x16xf32> to vector<8x16xf32>
    %24 = arith.mulf %22, %23 : vector<8x16xf32>
    %25 = vector.broadcast %2 : vector<1x16xf32> to vector<8x16xf32>
    %26 = arith.addf %24, %25 : vector<8x16xf32>
    %c0_9 = arith.constant 0 : index
    %c0_10 = arith.constant 0 : index
    %27 = vector.load %arg1[%c0_9, %c0_10] : memref<8x16xf32, #tpu.memory_space<vmem>>, vector<8x16xf32>
    %c1 = arith.constant 1 : index
    %c0_11 = arith.constant 0 : index
    %28 = vector.load %arg5[%c1, %c0_11] : memref<8x128xf32, #tpu.memory_space<vmem>>, vector<1x16xf32>
    %c3 = arith.constant 3 : index
    %c0_12 = arith.constant 0 : index
    %29 = vector.load %arg5[%c3, %c0_12] : memref<8x128xf32, #tpu.memory_space<vmem>>, vector<1x16xf32>
    %cst_13 = arith.constant dense<0.000000e+00> : vector<16xf32>
    %30 = vector.multi_reduction <add>, %27, %cst_13 [0] : vector<8x16xf32> to vector<16xf32>
    %31 = vector.shape_cast %30 : vector<16xf32> to vector<1x16xf32>
    %cst_14 = arith.constant 1.250000e-01 : f32
    %32 = vector.broadcast %cst_14 : f32 to vector<1x16xf32>
    %33 = arith.mulf %31, %32 : vector<1x16xf32>
    %34 = arith.mulf %27, %27 : vector<8x16xf32>
    %cst_15 = arith.constant dense<0.000000e+00> : vector<16xf32>
    %35 = vector.multi_reduction <add>, %34, %cst_15 [0] : vector<8x16xf32> to vector<16xf32>
    %36 = vector.shape_cast %35 : vector<16xf32> to vector<1x16xf32>
    %cst_16 = arith.constant 1.250000e-01 : f32
    %37 = vector.broadcast %cst_16 : f32 to vector<1x16xf32>
    %38 = arith.mulf %36, %37 : vector<1x16xf32>
    %39 = arith.mulf %33, %33 : vector<1x16xf32>
    %40 = arith.subf %38, %39 : vector<1x16xf32>
    %cst_17 = arith.constant 0.000000e+00 : f32
    %41 = vector.broadcast %cst_17 : f32 to vector<1x16xf32>
    %42 = arith.maximumf %40, %41 : vector<1x16xf32>
    %43 = vector.broadcast %33 : vector<1x16xf32> to vector<8x16xf32>
    %44 = arith.subf %27, %43 : vector<8x16xf32>
    %cst_18 = arith.constant 9.99999974E-6 : f32
    %45 = vector.broadcast %cst_18 : f32 to vector<1x16xf32>
    %46 = arith.addf %42, %45 : vector<1x16xf32>
    %47 = math.rsqrt %46 : vector<1x16xf32>
    %48 = vector.broadcast %47 : vector<1x16xf32> to vector<8x16xf32>
    %49 = arith.mulf %44, %48 : vector<8x16xf32>
    %50 = vector.broadcast %28 : vector<1x16xf32> to vector<8x16xf32>
    %51 = arith.mulf %49, %50 : vector<8x16xf32>
    %52 = vector.broadcast %29 : vector<1x16xf32> to vector<8x16xf32>
    %53 = arith.addf %51, %52 : vector<8x16xf32>
    %c0_19 = arith.constant 0 : index
    %c0_20 = arith.constant 0 : index
    %54 = vector.load %arg2[%c0_19, %c0_20] : memref<32x32xf32, #tpu.memory_space<vmem>>, vector<16x32xf32>
    %cst_21 = arith.constant dense<0.000000e+00> : vector<8x32xf32>
    %55 = tpu.matmul %26, %54, %cst_21 {dimension_numbers = #tpu.dot_dimension_numbers<[1], [0], [0], [1], [0, 0, 1, 1], [], []>} : vector<8x16xf32>, vector<16x32xf32>, vector<8x32xf32> -> vector<8x32xf32>
    %c16 = arith.constant 16 : index
    %c0_22 = arith.constant 0 : index
    %56 = vector.load %arg2[%c16, %c0_22] : memref<32x32xf32, #tpu.memory_space<vmem>>, vector<16x32xf32>
    %cst_23 = arith.constant dense<0.000000e+00> : vector<8x32xf32>
    %57 = tpu.matmul %53, %56, %cst_23 {dimension_numbers = #tpu.dot_dimension_numbers<[1], [0], [0], [1], [0, 0, 1, 1], [], []>} : vector<8x16xf32>, vector<16x32xf32>, vector<8x32xf32> -> vector<8x32xf32>
    %58 = arith.addf %55, %57 : vector<8x32xf32>
    %c4 = arith.constant 4 : index
    %c0_24 = arith.constant 0 : index
    %59 = vector.load %arg5[%c4, %c0_24] : memref<8x128xf32, #tpu.memory_space<vmem>>, vector<1x32xf32>
    %60 = vector.broadcast %59 : vector<1x32xf32> to vector<8x32xf32>
    %61 = arith.addf %58, %60 : vector<8x32xf32>
    %cst_25 = arith.constant 0.000000e+00 : f32
    %62 = vector.broadcast %cst_25 : f32 to vector<8x32xf32>
    %63 = arith.maximumf %61, %62 : vector<8x32xf32>
    %c0_26 = arith.constant 0 : index
    %c0_27 = arith.constant 0 : index
    %64 = vector.load %arg3[%c0_26, %c0_27] : memref<32x32xf32, #tpu.memory_space<vmem>>, vector<32x32xf32>
    %cst_28 = arith.constant dense<0.000000e+00> : vector<8x32xf32>
    %65 = tpu.matmul %63, %64, %cst_28 {dimension_numbers = #tpu.dot_dimension_numbers<[1], [0], [0], [1], [0, 0, 1, 1], [], []>} : vector<8x32xf32>, vector<32x32xf32>, vector<8x32xf32> -> vector<8x32xf32>
    %c5 = arith.constant 5 : index
    %c0_29 = arith.constant 0 : index
    %66 = vector.load %arg5[%c5, %c0_29] : memref<8x128xf32, #tpu.memory_space<vmem>>, vector<1x32xf32>
    %c6 = arith.constant 6 : index
    %c0_30 = arith.constant 0 : index
    %67 = vector.load %arg5[%c6, %c0_30] : memref<8x128xf32, #tpu.memory_space<vmem>>, vector<1x32xf32>
    %cst_31 = arith.constant dense<0.000000e+00> : vector<32xf32>
    %68 = vector.multi_reduction <add>, %65, %cst_31 [0] : vector<8x32xf32> to vector<32xf32>
    %69 = vector.shape_cast %68 : vector<32xf32> to vector<1x32xf32>
    %cst_32 = arith.constant 1.250000e-01 : f32
    %70 = vector.broadcast %cst_32 : f32 to vector<1x32xf32>
    %71 = arith.mulf %69, %70 : vector<1x32xf32>
    %72 = arith.mulf %65, %65 : vector<8x32xf32>
    %cst_33 = arith.constant dense<0.000000e+00> : vector<32xf32>
    %73 = vector.multi_reduction <add>, %72, %cst_33 [0] : vector<8x32xf32> to vector<32xf32>
    %74 = vector.shape_cast %73 : vector<32xf32> to vector<1x32xf32>
    %cst_34 = arith.constant 1.250000e-01 : f32
    %75 = vector.broadcast %cst_34 : f32 to vector<1x32xf32>
    %76 = arith.mulf %74, %75 : vector<1x32xf32>
    %77 = arith.mulf %71, %71 : vector<1x32xf32>
    %78 = arith.subf %76, %77 : vector<1x32xf32>
    %cst_35 = arith.constant 0.000000e+00 : f32
    %79 = vector.broadcast %cst_35 : f32 to vector<1x32xf32>
    %80 = arith.maximumf %78, %79 : vector<1x32xf32>
    %81 = vector.broadcast %71 : vector<1x32xf32> to vector<8x32xf32>
    %82 = arith.subf %65, %81 : vector<8x32xf32>
    %cst_36 = arith.constant 9.99999974E-6 : f32
    %83 = vector.broadcast %cst_36 : f32 to vector<1x32xf32>
    %84 = arith.addf %80, %83 : vector<1x32xf32>
    %85 = math.rsqrt %84 : vector<1x32xf32>
    %86 = vector.broadcast %85 : vector<1x32xf32> to vector<8x32xf32>
    %87 = arith.mulf %82, %86 : vector<8x32xf32>
    %88 = vector.broadcast %66 : vector<1x32xf32> to vector<8x32xf32>
    %89 = arith.mulf %87, %88 : vector<8x32xf32>
    %90 = vector.broadcast %67 : vector<1x32xf32> to vector<8x32xf32>
    %91 = arith.addf %89, %90 : vector<8x32xf32>
    %cst_37 = arith.constant 0.000000e+00 : f32
    %92 = vector.broadcast %cst_37 : f32 to vector<8x32xf32>
    %93 = arith.maximumf %91, %92 : vector<8x32xf32>
    %c0_38 = arith.constant 0 : index
    %c0_39 = arith.constant 0 : index
    %94 = vector.load %arg4[%c0_38, %c0_39] : memref<32x128xf32, #tpu.memory_space<vmem>>, vector<32x128xf32>
    %cst_40 = arith.constant dense<0.000000e+00> : vector<8x128xf32>
    %95 = tpu.matmul %93, %94, %cst_40 {dimension_numbers = #tpu.dot_dimension_numbers<[1], [0], [0], [1], [0, 0, 1, 1], [], []>} : vector<8x32xf32>, vector<32x128xf32>, vector<8x128xf32> -> vector<8x128xf32>
    %c7 = arith.constant 7 : index
    %c0_41 = arith.constant 0 : index
    %96 = vector.load %arg5[%c7, %c0_41] : memref<8x128xf32, #tpu.memory_space<vmem>>, vector<1x128xf32>
    %97 = vector.broadcast %96 : vector<1x128xf32> to vector<8x128xf32>
    %98 = arith.addf %95, %97 : vector<8x128xf32>
    %cst_42 = arith.constant 0.000000e+00 : f32
    %99 = vector.broadcast %cst_42 : f32 to vector<8x128xf32>
    %100 = arith.subf %99, %98 : vector<8x128xf32>
    %101 = math.exp %100 : vector<8x128xf32>
    %cst_43 = arith.constant 1.000000e+00 : f32
    %102 = vector.broadcast %cst_43 : f32 to vector<8x128xf32>
    %103 = arith.addf %102, %101 : vector<8x128xf32>
    %cst_44 = arith.constant 1.000000e+00 : f32
    %104 = vector.broadcast %cst_44 : f32 to vector<8x128xf32>
    %105 = arith.divf %104, %103 : vector<8x128xf32>
    %c0_45 = arith.constant 0 : index
    %c0_46 = arith.constant 0 : index
    %106 = vector.load %arg6[%c0_45, %c0_46] : memref<8x128xf32, #tpu.memory_space<vmem>>, vector<8x128xf32>
    tpu.vector_store %arg6[%c0_45, %c0_46], %105 {strides = array<i32>} : memref<8x128xf32, #tpu.memory_space<vmem>>, vector<8x128xf32>,
    return
  }
}

</mosaic_0001>

<llo_original>
// kernel: tpu_custom_call.1
$region0: #{tpu_custom_call.1}
  #allocation0 [shape = 'u32[]', space=smem, size = 0x4, offset = 0x4, fixed_abs, tag = 'smem constant byte address 0x4 - core index']
  #allocation1 [shape = 'u32[144,128]{1,0:T(1,128)}', space=vmem, size = 0x12000, scoped, tag = 'internal scratch']
  %s0 = inlined_call_operand.hbm [shape: f32[8,16], index: 0, kind: input, shape index: {}]
  %s1 = inlined_call_operand.hbm [shape: f32[8,16], index: 1, kind: input, shape index: {}]
  %s2 = inlined_call_operand.hbm [shape: f32[32,32], index: 2, kind: input, shape index: {}]
  %s3 = inlined_call_operand.hbm [shape: f32[32,32], index: 3, kind: input, shape index: {}]
  %s4 = inlined_call_operand.hbm [shape: f32[32,128], index: 4, kind: input, shape index: {}]
  %s5 = inlined_call_operand.vmem [shape: f32[8,128], index: 5, kind: input, shape index: {}]
  %s6 = inlined_call_operand.hbm [shape: f32[8,128], index: 6, kind: output, shape index: {}]
  %s7 = sld [smem:[#allocation0]]
  $region54: #{tpu_custom_call.1} parent=0
    _
  %s9 = ssub.s32 1, %s7
  %s10 = scalar_select 0, %s9, %s7
  $region1: #{tpu_custom_call.1} parent=0
    #allocation2 [shape = 'u8[4096]{0}', space=vmem, size = 0x1000, scoped, tag = 'input window, operand 0, single buffered']
    #allocation3 [shape = 's32[1]{0}', space=sflag, size = 0x4, scoped, tag = 'scoped memory for tpu_custom_call.1']
    #allocation4 [shape = 's32[1]{0}', space=sflag, size = 0x4, scoped, tag = 'scoped memory for tpu_custom_call.1']
    #allocation5 [shape = 'u8[4096]{0}', space=vmem, size = 0x1000, scoped, tag = 'input window, operand 1, single buffered']
    #allocation6 [shape = 's32[1]{0}', space=sflag, size = 0x4, scoped, tag = 'scoped memory for tpu_custom_call.1']
    #allocation7 [shape = 'u8[16384]{0}', space=vmem, size = 0x4000, scoped, tag = 'input window, operand 2, single buffered']
    #allocation8 [shape = 'u8[16384]{0}', space=vmem, size = 0x4000, scoped, tag = 'input window, operand 3, single buffered']
    #allocation9 [shape = 's32[1]{0}', space=sflag, size = 0x4, scoped, tag = 'scoped memory for tpu_custom_call.1']
    #allocation10 [shape = 'u8[16384]{0}', space=vmem, size = 0x4000, scoped, tag = 'input window, operand 4, single buffered']
    #allocation11 [shape = 'u8[4096]{0}', space=vmem, size = 0x1000, scoped, tag = 'output window, operand 0, single buffered']
    %11 = vsyncpa [#allocation3], 0
    %12 = vsyncpa [#allocation6], 0
    %13 = vsyncpa [#allocation9], 0
    %14 = vsyncpa [#allocation4], 0
    // Predicated region
    $region2: #{tpu_custom_call.1} parent=1 // pred_check
      _
    $region3: #{tpu_custom_call.1} parent=1 // pred_check_branch
      %16 = sbr.rel (0) target = $region5
    $region4: #{tpu_custom_call.1} parent=1 // pred_region
      %s18 = ssub.s32 128, 128
      %19 = vsyncadd [#allocation3], %s18
      %s21 = sshll.u32 [#allocation2], 4
      %s22 = int_to_ptr.vmem [resolvable:$true] %s21
      %24 = dma.hbm_to_vmem [thread:$0]  %s0, 128, %s22, [#allocation3]
    $region5: #{tpu_custom_call.1} parent=1 // pred_fallthru
      _
    // Predicated region
    $region6: #{tpu_custom_call.1} parent=1 // pred_check
      _
    $region7: #{tpu_custom_call.1} parent=1 // pred_check_branch
      %26 = sbr.rel (0) target = $region9
    $region8: #{tpu_custom_call.1} parent=1 // pred_region
      %s28 = ssub.s32 128, 128
      %29 = vsyncadd [#allocation6], %s28
      %s31 = sshll.u32 [#allocation5], 4
      %s32 = int_to_ptr.vmem [resolvable:$true] %s31
      %34 = dma.hbm_to_vmem [thread:$0]  %s1, 128, %s32, [#allocation6]
    $region9: #{tpu_custom_call.1} parent=1 // pred_fallthru
      _
    // Predicated region
    $region10: #{tpu_custom_call.1} parent=1 // pred_check
      _
    $region11: #{tpu_custom_call.1} parent=1 // pred_check_branch
      %36 = sbr.rel (0) target = $region13
    $region12: #{tpu_custom_call.1} parent=1 // pred_region
      %s38 = ssub.s32 512, 512
      %39 = vsyncadd [#allocation6], %s38
      %s40 = sshll.u32 [#allocation7], 4
      %s41 = int_to_ptr.vmem [resolvable:$true] %s40
      %46 = dma.hbm_to_vmem [thread:$0]  %s2, 512, %s41, [#allocation6], 128, 128, 8
    $region13: #{tpu_custom_call.1} parent=1 // pred_fallthru
      _
    // Predicated region
    $region14: #{tpu_custom_call.1} parent=1 // pred_check
      _
    $region15: #{tpu_custom_call.1} parent=1 // pred_check_branch
      %48 = sbr.rel (0) target = $region17
    $region16: #{tpu_custom_call.1} parent=1 // pred_region
      %s50 = ssub.s32 512, 512
      %51 = vsyncadd [#allocation9], %s50
      %s52 = sshll.u32 [#allocation8], 4
      %s53 = int_to_ptr.vmem [resolvable:$true] %s52
      %58 = dma.hbm_to_vmem [thread:$0]  %s3, 512, %s53, [#allocation9], 128, 128, 8
    $region17: #{tpu_custom_call.1} parent=1 // pred_fallthru
      _
    // Predicated region
    $region18: #{tpu_custom_call.1} parent=1 // pred_check
      _
    $region19: #{tpu_custom_call.1} parent=1 // pred_check_branch
      %60 = sbr.rel (0) target = $region21
    $region20: #{tpu_custom_call.1} parent=1 // pred_region
      %s62 = ssub.s32 512, 512
      %63 = vsyncadd [#allocation9], %s62
      %s64 = sshll.u32 [#allocation10], 4
      %s65 = int_to_ptr.vmem [resolvable:$true] %s64
      %70 = dma.hbm_to_vmem [thread:$0]  %s4, 512, %s65, [#allocation9], 128, 128, 8
    $region21: #{tpu_custom_call.1} parent=1 // pred_fallthru
      _
    // Predicated region
    $region22: #{tpu_custom_call.1} parent=1 // pred_check
      _
    $region23: #{tpu_custom_call.1} parent=1 // pred_check_branch
      %72 = sbr.rel (0) target = $region25
    $region24: #{tpu_custom_call.1} parent=1 // pred_region
      _
    $region25: #{tpu_custom_call.1} parent=1 // pred_fallthru
      _
    // Predicated region
    $region26: #{tpu_custom_call.1} parent=1 // pred_check
      _
    $region27: #{tpu_custom_call.1} parent=1 // pred_check_branch
      %74 = sbr.rel (0) target = $region29
    $region28: #{tpu_custom_call.1} parent=1 // pred_region
      %75 = dma.done [#allocation3], 128
    $region29: #{tpu_custom_call.1} parent=1 // pred_fallthru
      _
    // Predicated region
    $region30: #{tpu_custom_call.1} parent=1 // pred_check
      _
    $region31: #{tpu_custom_call.1} parent=1 // pred_check_branch
      %77 = sbr.rel (0) target = $region33
    $region32: #{tpu_custom_call.1} parent=1 // pred_region
      %78 = dma.done [#allocation6], 128
    $region33: #{tpu_custom_call.1} parent=1 // pred_fallthru
      _
    // Predicated region
    $region34: #{tpu_custom_call.1} parent=1 // pred_check
      _
    $region35: #{tpu_custom_call.1} parent=1 // pred_check_branch
      %80 = sbr.rel (0) target = $region37
    $region36: #{tpu_custom_call.1} parent=1 // pred_region
      %81 = dma.done [#allocation6], 512
    $region37: #{tpu_custom_call.1} parent=1 // pred_fallthru
      _
    // Predicated region
    $region38: #{tpu_custom_call.1} parent=1 // pred_check
      _
    $region39: #{tpu_custom_call.1} parent=1 // pred_check_branch
      %83 = sbr.rel (0) target = $region41
    $region40: #{tpu_custom_call.1} parent=1 // pred_region
      %84 = dma.done [#allocation9], 512
    $region41: #{tpu_custom_call.1} parent=1 // pred_fallthru
      _
    // Predicated region
    $region42: #{tpu_custom_call.1} parent=1 // pred_check
      _
    $region43: #{tpu_custom_call.1} parent=1 // pred_check_branch
      %86 = sbr.rel (0) target = $region45
    $region44: #{tpu_custom_call.1} parent=1 // pred_region
      %87 = dma.done [#allocation9], 512
    $region45: #{tpu_custom_call.1} parent=1 // pred_fallthru
      _
    %v88 = vld [vmem:[#allocation2] sm:$0xff]
    %v89 = vld [vmem:[%s5] sm:$0x1]
    %v90 = vld [vmem:[%s5 + $0x2] sm:$0x1]
    %vm91 = vcmask 130048
    %v92 = vsel %vm91, %v88, 0.0
    %v93 = vrot.slane %v92, 4
    %v94 = vadd.f32 %v92, %v93
    %v95 = vrot.slane %v94, 2
    %v96 = vadd.f32 %v94, %v95
    %v97 = vrot.slane %v96, 1
    %v98 = vadd.f32 %v96, %v97
    %v99 = vmul.f32 %v98, 0.125
    %v100 = vmul.f32 %v88, %v88
    %v101 = vsel %vm91, %v100, 0.0
    %v102 = vrot.slane %v101, 4
    %v103 = vadd.f32 %v101, %v102
    %v104 = vrot.slane %v103, 2
    %v105 = vadd.f32 %v103, %v104
    %v106 = vrot.slane %v105, 1
    %v107 = vadd.f32 %v105, %v106
    %v108 = vmul.f32 %v107, 0.125
    %v109 = vmul.f32 %v99, %v99
    %v110 = vsub.f32 %v108, %v109
    %v111 = vmax.f32 %v110, 0.0
    %v112 = vsub.f32 %v88, %v99
    %v113 = vadd.f32 %v111, 1e-05
    %v114 = vrsqrt.pop %v113
    %v115 = vmul.f32 %v112, %v114
    %v116 = vlaneseq
    %v117 = vshrl.u32 %v116, 7
    %v118 = vsub.s32 0, %v117
    %v119 = vrot.slane %v89, %v118
    %v120 = vmul.f32 %v115, %v119
    %v121 = vlaneseq
    %v122 = vshrl.u32 %v121, 7
    %v123 = vsub.s32 0, %v122
    %v124 = vrot.slane %v90, %v123
    %v125 = vadd.f32 %v120, %v124
    %v126 = vld [vmem:[#allocation5] sm:$0xff]
    %v127 = vld [vmem:[%s5 + $0x1] sm:$0x1]
    %v128 = vld [vmem:[%s5 + $0x3] sm:$0x1]
    %v129 = vsel %vm91, %v126, 0.0
    %v130 = vrot.slane %v129, 4
    %v131 = vadd.f32 %v129, %v130
    %v132 = vrot.slane %v131, 2
    %v133 = vadd.f32 %v131, %v132
    %v134 = vrot.slane %v133, 1
    %v135 = vadd.f32 %v133, %v134
    %v136 = vmul.f32 %v135, 0.125
    %v137 = vmul.f32 %v126, %v126
    %v138 = vsel %vm91, %v137, 0.0
    %v139 = vrot.slane %v138, 4
    %v140 = vadd.f32 %v138, %v139
    %v141 = vrot.slane %v140, 2
    %v142 = vadd.f32 %v140, %v141
    %v143 = vrot.slane %v142, 1
    %v144 = vadd.f32 %v142, %v143
    %v145 = vmul.f32 %v144, 0.125
    %v146 = vmul.f32 %v136, %v136
    %v147 = vsub.f32 %v145, %v146
    %v148 = vmax.f32 %v147, 0.0
    %v149 = vsub.f32 %v126, %v136
    %v150 = vadd.f32 %v148, 1e-05
    %v151 = vrsqrt.pop %v150
    %v152 = vmul.f32 %v149, %v151
    %v153 = vlaneseq
    %v154 = vshrl.u32 %v153, 7
    %v155 = vsub.s32 0, %v154
    %v156 = vrot.slane %v127, %v155
    %v157 = vmul.f32 %v152, %v156
    %v158 = vlaneseq
    %v159 = vshrl.u32 %v158, 7
    %v160 = vsub.s32 0, %v159
    %v161 = vrot.slane %v128, %v160
    %v162 = vadd.f32 %v157, %v161
    %v163 = vld [vmem:[#allocation7] sm:$0xff]
    %v164 = vld [vmem:[#allocation7 + $0x8] sm:$0xff]
    %v165 = vld [vmem:[#allocation7 + $0x10] sm:$0xff]
    %v166 = vld [vmem:[#allocation7 + $0x18] sm:$0xff]
    %v168 = vsel %vm91, %v162, 0
    %170 = vmatprep.subr.mxu0 0.0
    %171 = vmatpush1.msra.mxu0 0.0
    %172 = vmatprep.subr.mxu0 0.0
    %173 = vmatpush1.msra.mxu0 0.0
    %174 = vmatprep.subr.mxu0 0.0
    %175 = vmatpush1.msra.mxu0 0.0
    %176 = vmatprep.subr.mxu0 0.0
    %177 = vmatpush1.msra.mxu0 0.0
    %178 = vmatprep.subr.mxu0 0.0
    %179 = vmatpush1.msra.mxu0 0.0
    %180 = vmatprep.subr.mxu0 0.0
    %181 = vmatpush1.msra.mxu0 0.0
    %182 = vmatprep.subr.mxu0 0.0
    %183 = vmatpush1.msra.mxu0 0.0
    %184 = vmatprep.subr.mxu0 0.0
    %185 = vmatpush1.msra.mxu0 0.0
    %186 = vmatprep.subr.mxu0 0.0
    %187 = vmatpush1.msra.mxu0 0.0
    %188 = vmatprep.subr.mxu0 0.0
    %189 = vmatpush1.msra.mxu0 0.0
    %190 = vmatprep.subr.mxu0 0.0
    %191 = vmatpush1.msra.mxu0 0.0
    %192 = vmatprep.subr.mxu0 0.0
    %193 = vmatpush1.msra.mxu0 0.0
    %194 = vmatprep.subr.mxu0 0.0
    %195 = vmatpush1.msra.mxu0 0.0
    %196 = vmatprep.subr.mxu0 0.0
    %197 = vmatpush1.msra.mxu0 0.0
    %198 = vmatprep.subr.mxu0 0.0
    %199 = vmatpush1.msra.mxu0 %v166
    %200 = vmatprep.subr.mxu0 0.0
    %201 = vmatpush1.msra.mxu0 %v165
    %202 = vmatprep.subr.mxu0 0.0
    %203 = vmatpush2.msra.mxu0 0.0
    %204 = vmatprep.subr.mxu0 0.0
    %205 = vmatpush2.msra.mxu0 0.0
    %206 = vmatprep.subr.mxu0 0.0
    %207 = vmatpush2.msra.mxu0 0.0
    %208 = vmatprep.subr.mxu0 0.0
    %209 = vmatpush2.msra.mxu0 0.0
    %210 = vmatprep.subr.mxu0 0.0
    %211 = vmatpush2.msra.mxu0 0.0
    %212 = vmatprep.subr.mxu0 0.0
    %213 = vmatpush2.msra.mxu0 0.0
    %214 = vmatprep.subr.mxu0 0.0
    %215 = vmatpush2.msra.mxu0 0.0
    %216 = vmatprep.subr.mxu0 0.0
    %217 = vmatpush2.msra.mxu0 0.0
    %218 = vmatprep.subr.mxu0 0.0
    %219 = vmatpush2.msra.mxu0 0.0
    %220 = vmatprep.subr.mxu0 0.0
    %221 = vmatpush2.msra.mxu0 0.0
    %222 = vmatprep.subr.mxu0 0.0
    %223 = vmatpush2.msra.mxu0 0.0
    %224 = vmatprep.subr.mxu0 0.0
    %225 = vmatpush2.msra.mxu0 0.0
    %226 = vmatprep.subr.mxu0 0.0
    %227 = vmatpush2.msra.mxu0 0.0
    %228 = vmatprep.subr.mxu0 0.0
    %229 = vmatpush2.msra.mxu0 0.0
    %230 = vmatprep.subr.mxu0 0.0
    %231 = vmatpush2.msra.mxu0 0.0
    %232 = vmatprep.subr.mxu0 0.0
    %233 = vmatpush2.msra.mxu0 0.0
    %234 = vmatprep.mubr.f32.mxu0 0.0
    %235 = vmatmul.mubr.f32.gmra.mxu0 %v168
    %v236 = vpop.f32.mrf.mxu0
    %v237 = vadd.f32 0.0, %v236
    %v238 = vpop.f32.mrf.mxu0
    %239 = vdwg.mxu0
    %v241 = vsel %vm91, %v125, 0
    %243 = vmatprep.subr.mxu0 0.0
    %244 = vmatpush1.msra.mxu0 0.0
    %245 = vmatprep.subr.mxu0 0.0
    %246 = vmatpush1.msra.mxu0 0.0
    %247 = vmatprep.subr.mxu0 0.0
    %248 = vmatpush1.msra.mxu0 0.0
    %249 = vmatprep.subr.mxu0 0.0
    %250 = vmatpush1.msra.mxu0 0.0
    %251 = vmatprep.subr.mxu0 0.0
    %252 = vmatpush1.msra.mxu0 0.0
    %253 = vmatprep.subr.mxu0 0.0
    %254 = vmatpush1.msra.mxu0 0.0
    %255 = vmatprep.subr.mxu0 0.0
    %256 = vmatpush1.msra.mxu0 0.0
    %257 = vmatprep.subr.mxu0 0.0
    %258 = vmatpush1.msra.mxu0 0.0
    %259 = vmatprep.subr.mxu0 0.0
    %260 = vmatpush1.msra.mxu0 0.0
    %261 = vmatprep.subr.mxu0 0.0
    %262 = vmatpush1.msra.mxu0 0.0
    %263 = vmatprep.subr.mxu0 0.0
    %264 = vmatpush1.msra.mxu0 0.0
    %265 = vmatprep.subr.mxu0 0.0
    %266 = vmatpush1.msra.mxu0 0.0
    %267 = vmatprep.subr.mxu0 0.0
    %268 = vmatpush1.msra.mxu0 0.0
    %269 = vmatprep.subr.mxu0 0.0
    %270 = vmatpush1.msra.mxu0 0.0
    %271 = vmatprep.subr.mxu0 0.0
    %272 = vmatpush1.msra.mxu0 %v164
    %273 = vmatprep.subr.mxu0 0.0
    %274 = vmatpush1.msra.mxu0 %v163
    %275 = vmatprep.subr.mxu0 0.0
    %276 = vmatpush2.msra.mxu0 0.0
    %277 = vmatprep.subr.mxu0 0.0
    %278 = vmatpush2.msra.mxu0 0.0
    %279 = vmatprep.subr.mxu0 0.0
    %280 = vmatpush2.msra.mxu0 0.0
    %281 = vmatprep.subr.mxu0 0.0
    %282 = vmatpush2.msra.mxu0 0.0
    %283 = vmatprep.subr.mxu0 0.0
    %284 = vmatpush2.msra.mxu0 0.0
    %285 = vmatprep.subr.mxu0 0.0
    %286 = vmatpush2.msra.mxu0 0.0
    %287 = vmatprep.subr.mxu0 0.0
    %288 = vmatpush2.msra.mxu0 0.0
    %289 = vmatprep.subr.mxu0 0.0
    %290 = vmatpush2.msra.mxu0 0.0
    %291 = vmatprep.subr.mxu0 0.0
    %292 = vmatpush2.msra.mxu0 0.0
    %293 = vmatprep.subr.mxu0 0.0
    %294 = vmatpush2.msra.mxu0 0.0
    %295 = vmatprep.subr.mxu0 0.0
    %296 = vmatpush2.msra.mxu0 0.0
    %297 = vmatprep.subr.mxu0 0.0
    %298 = vmatpush2.msra.mxu0 0.0
    %299 = vmatprep.subr.mxu0 0.0
    %300 = vmatpush2.msra.mxu0 0.0
    %301 = vmatprep.subr.mxu0 0.0
    %302 = vmatpush2.msra.mxu0 0.0
    %303 = vmatprep.subr.mxu0 0.0
    %304 = vmatpush2.msra.mxu0 0.0
    %305 = vmatprep.subr.mxu0 0.0
    %306 = vmatpush2.msra.mxu0 0.0
    %307 = vmatprep.mubr.f32.mxu0 0.0
    %308 = vmatmul.mubr.f32.gmra.mxu0 %v241
    %v309 = vpop.f32.mrf.mxu0
    %v310 = vadd.f32 %v237, %v309
    %v311 = vpop.f32.mrf.mxu0
    %312 = vdwg.mxu0
    %v313 = vld [vmem:[%s5 + $0x4] sm:$0x1]
    %v314 = vlaneseq
    %v315 = vshrl.u32 %v314, 7
    %v316 = vsub.s32 0, %v315
    %v317 = vrot.slane %v313, %v316
    %v318 = vadd.f32 %v310, %v317
    %v319 = vmax.f32 %v318, 0.0
    %v320 = vld [vmem:[#allocation8] sm:$0xff]
    %v321 = vld [vmem:[#allocation8 + $0x8] sm:$0xff]
    %v322 = vld [vmem:[#allocation8 + $0x10] sm:$0xff]
    %v323 = vld [vmem:[#allocation8 + $0x18] sm:$0xff]
    %vm324 = vcmask 261120
    %v326 = vsel %vm324, %v319, 0
    %328 = vmatprep.subr.mxu0 0.0
    %329 = vmatpush1.msra.mxu0 0.0
    %330 = vmatprep.subr.mxu0 0.0
    %331 = vmatpush1.msra.mxu0 0.0
    %332 = vmatprep.subr.mxu0 0.0
    %333 = vmatpush1.msra.mxu0 0.0
    %334 = vmatprep.subr.mxu0 0.0
    %335 = vmatpush1.msra.mxu0 0.0
    %336 = vmatprep.subr.mxu0 0.0
    %337 = vmatpush1.msra.mxu0 0.0
    %338 = vmatprep.subr.mxu0 0.0
    %339 = vmatpush1.msra.mxu0 0.0
    %340 = vmatprep.subr.mxu0 0.0
    %341 = vmatpush1.msra.mxu0 0.0
    %342 = vmatprep.subr.mxu0 0.0
    %343 = vmatpush1.msra.mxu0 0.0
    %344 = vmatprep.subr.mxu0 0.0
    %345 = vmatpush1.msra.mxu0 0.0
    %346 = vmatprep.subr.mxu0 0.0
    %347 = vmatpush1.msra.mxu0 0.0
    %348 = vmatprep.subr.mxu0 0.0
    %349 = vmatpush1.msra.mxu0 0.0
    %350 = vmatprep.subr.mxu0 0.0
    %351 = vmatpush1.msra.mxu0 0.0
    %352 = vmatprep.subr.mxu0 0.0
    %353 = vmatpush1.msra.mxu0 %v323
    %354 = vmatprep.subr.mxu0 0.0
    %355 = vmatpush1.msra.mxu0 %v322
    %356 = vmatprep.subr.mxu0 0.0
    %357 = vmatpush1.msra.mxu0 %v321
    %358 = vmatprep.subr.mxu0 0.0
    %359 = vmatpush1.msra.mxu0 %v320
    %360 = vmatprep.subr.mxu0 0.0
    %361 = vmatpush2.msra.mxu0 0.0
    %362 = vmatprep.subr.mxu0 0.0
    %363 = vmatpush2.msra.mxu0 0.0
    %364 = vmatprep.subr.mxu0 0.0
    %365 = vmatpush2.msra.mxu0 0.0
    %366 = vmatprep.subr.mxu0 0.0
    %367 = vmatpush2.msra.mxu0 0.0
    %368 = vmatprep.subr.mxu0 0.0
    %369 = vmatpush2.msra.mxu0 0.0
    %370 = vmatprep.subr.mxu0 0.0
    %371 = vmatpush2.msra.mxu0 0.0
    %372 = vmatprep.subr.mxu0 0.0
    %373 = vmatpush2.msra.mxu0 0.0
    %374 = vmatprep.subr.mxu0 0.0
    %375 = vmatpush2.msra.mxu0 0.0
    %376 = vmatprep.subr.mxu0 0.0
    %377 = vmatpush2.msra.mxu0 0.0
    %378 = vmatprep.subr.mxu0 0.0
    %379 = vmatpush2.msra.mxu0 0.0
    %380 = vmatprep.subr.mxu0 0.0
    %381 = vmatpush2.msra.mxu0 0.0
    %382 = vmatprep.subr.mxu0 0.0
    %383 = vmatpush2.msra.mxu0 0.0
    %384 = vmatprep.subr.mxu0 0.0
    %385 = vmatpush2.msra.mxu0 0.0
    %386 = vmatprep.subr.mxu0 0.0
    %387 = vmatpush2.msra.mxu0 0.0
    %388 = vmatprep.subr.mxu0 0.0
    %389 = vmatpush2.msra.mxu0 0.0
    %390 = vmatprep.subr.mxu0 0.0
    %391 = vmatpush2.msra.mxu0 0.0
    %392 = vmatprep.mubr.f32.mxu0 0.0
    %393 = vmatmul.mubr.f32.gmra.mxu0 %v326
    %v394 = vpop.f32.mrf.mxu0
    %v395 = vadd.f32 0.0, %v394
    %v396 = vpop.f32.mrf.mxu0
    %397 = vdwg.mxu0
    %v398 = vld [vmem:[%s5 + $0x5] sm:$0x1]
    %v399 = vld [vmem:[%s5 + $0x6] sm:$0x1]
    %v400 = vsel %vm324, %v395, 0.0
    %v401 = vrot.slane %v400, 4
    %v402 = vadd.f32 %v400, %v401
    %v403 = vrot.slane %v402, 2
    %v404 = vadd.f32 %v402, %v403
    %v405 = vrot.slane %v404, 1
    %v406 = vadd.f32 %v404, %v405
    %v407 = vmul.f32 %v406, 0.125
    %v408 = vmul.f32 %v395, %v395
    %v409 = vsel %vm324, %v408, 0.0
    %v410 = vrot.slane %v409, 4
    %v411 = vadd.f32 %v409, %v410
    %v412 = vrot.slane %v411, 2
    %v413 = vadd.f32 %v411, %v412
    %v414 = vrot.slane %v413, 1
    %v415 = vadd.f32 %v413, %v414
    %v416 = vmul.f32 %v415, 0.125
    %v417 = vmul.f32 %v407, %v407
    %v418 = vsub.f32 %v416, %v417
    %v419 = vmax.f32 %v418, 0.0
    %v420 = vsub.f32 %v395, %v407
    %v421 = vadd.f32 %v419, 1e-05
    %v422 = vrsqrt.pop %v421
    %v423 = vmul.f32 %v420, %v422
    %v424 = vlaneseq
    %v425 = vshrl.u32 %v424, 7
    %v426 = vsub.s32 0, %v425
    %v427 = vrot.slane %v398, %v426
    %v428 = vmul.f32 %v423, %v427
    %v429 = vlaneseq
    %v430 = vshrl.u32 %v429, 7
    %v431 = vsub.s32 0, %v430
    %v432 = vrot.slane %v399, %v431
    %v433 = vadd.f32 %v428, %v432
    %v434 = vmax.f32 %v433, 0.0
    %v435 = vld [vmem:[#allocation10] sm:$0xff]
    %v436 = vld [vmem:[#allocation10 + $0x8] sm:$0xff]
    %v437 = vld [vmem:[#allocation10 + $0x10] sm:$0xff]
    %v438 = vld [vmem:[#allocation10 + $0x18] sm:$0xff]
    %v439 = vld [vmem:[%s5 + $0x7] sm:$0x1]
    %v440 = vlaneseq
    %v441 = vshrl.u32 %v440, 7
    %v442 = vsub.s32 0, %v441
    %v443 = vrot.slane %v439, %v442
    %v445 = vsel %vm324, %v434, 0
    %447 = vmatprep.subr.mxu0 0.0
    %448 = vmatpush1.msra.mxu0 0.0
    %449 = vmatprep.subr.mxu0 0.0
    %450 = vmatpush1.msra.mxu0 0.0
    %451 = vmatprep.subr.mxu0 0.0
    %452 = vmatpush1.msra.mxu0 0.0
    %453 = vmatprep.subr.mxu0 0.0
    %454 = vmatpush1.msra.mxu0 0.0
    %455 = vmatprep.subr.mxu0 0.0
    %456 = vmatpush1.msra.mxu0 0.0
    %457 = vmatprep.subr.mxu0 0.0
    %458 = vmatpush1.msra.mxu0 0.0
    %459 = vmatprep.subr.mxu0 0.0
    %460 = vmatpush1.msra.mxu0 0.0
    %461 = vmatprep.subr.mxu0 0.0
    %462 = vmatpush1.msra.mxu0 0.0
    %463 = vmatprep.subr.mxu0 0.0
    %464 = vmatpush1.msra.mxu0 0.0
    %465 = vmatprep.subr.mxu0 0.0
    %466 = vmatpush1.msra.mxu0 0.0
    %467 = vmatprep.subr.mxu0 0.0
    %468 = vmatpush1.msra.mxu0 0.0
    %469 = vmatprep.subr.mxu0 0.0
    %470 = vmatpush1.msra.mxu0 0.0
    %471 = vmatprep.subr.mxu0 0.0
    %472 = vmatpush1.msra.mxu0 %v438
    %473 = vmatprep.subr.mxu0 0.0
    %474 = vmatpush1.msra.mxu0 %v437
    %475 = vmatprep.subr.mxu0 0.0
    %476 = vmatpush1.msra.mxu0 %v436
    %477 = vmatprep.subr.mxu0 0.0
    %478 = vmatpush1.msra.mxu0 %v435
    %479 = vmatprep.subr.mxu0 0.0
    %480 = vmatpush2.msra.mxu0 0.0
    %481 = vmatprep.subr.mxu0 0.0
    %482 = vmatpush2.msra.mxu0 0.0
    %483 = vmatprep.subr.mxu0 0.0
    %484 = vmatpush2.msra.mxu0 0.0
    %485 = vmatprep.subr.mxu0 0.0
    %486 = vmatpush2.msra.mxu0 0.0
    %487 = vmatprep.subr.mxu0 0.0
    %488 = vmatpush2.msra.mxu0 0.0
    %489 = vmatprep.subr.mxu0 0.0
    %490 = vmatpush2.msra.mxu0 0.0
    %491 = vmatprep.subr.mxu0 0.0
    %492 = vmatpush2.msra.mxu0 0.0
    %493 = vmatprep.subr.mxu0 0.0
    %494 = vmatpush2.msra.mxu0 0.0
    %495 = vmatprep.subr.mxu0 0.0
    %496 = vmatpush2.msra.mxu0 0.0
    %497 = vmatprep.subr.mxu0 0.0
    %498 = vmatpush2.msra.mxu0 0.0
    %499 = vmatprep.subr.mxu0 0.0
    %500 = vmatpush2.msra.mxu0 0.0
    %501 = vmatprep.subr.mxu0 0.0
    %502 = vmatpush2.msra.mxu0 0.0
    %503 = vmatprep.subr.mxu0 0.0
    %504 = vmatpush2.msra.mxu0 0.0
    %505 = vmatprep.subr.mxu0 0.0
    %506 = vmatpush2.msra.mxu0 0.0
    %507 = vmatprep.subr.mxu0 0.0
    %508 = vmatpush2.msra.mxu0 0.0
    %509 = vmatprep.subr.mxu0 0.0
    %510 = vmatpush2.msra.mxu0 0.0
    %511 = vmatprep.mubr.f32.mxu0 0.0
    %512 = vmatmul.mubr.f32.gmra.mxu0 %v445
    %v513 = vpop.f32.mrf.mxu0
    %v514 = vadd.f32 %v443, %v513
    %v515 = vpop.f32.mrf.mxu0
    %516 = vdwg.mxu0
    %v517 = vsub.f32 0.0, %v514
    %v518 = vmul.f32 %v517, 1.442695
    %v519 = vpow.pop %v518
    %v520 = vadd.f32 %v519, 1.0
    %v521 = vrcp.pop %v520
    %v522 = vmul.f32 1.0, %v521
    %523 = vst [vmem:[#allocation11] sm:$0xff] %v522
    // Predicated region
    $region46: #{tpu_custom_call.1} parent=1 // pred_check
      _
    $region47: #{tpu_custom_call.1} parent=1 // pred_check_branch
      %525 = sbr.rel (0) target = $region49
    $region48: #{tpu_custom_call.1} parent=1 // pred_region
      %s527 = ssub.s32 128, 128
      %528 = vsyncadd [#allocation4], %s527
      %s530 = sshll.u32 [#allocation11], 4
      %s531 = int_to_ptr.vmem [resolvable:$true] %s530
      %533 = dma.vmem_to_hbm [thread:$0]  %s531, 128, %s6, [#allocation4]
    $region49: #{tpu_custom_call.1} parent=1 // pred_fallthru
      _
    // Predicated region
    $region50: #{tpu_custom_call.1} parent=1 // pred_check
      _
    $region51: #{tpu_custom_call.1} parent=1 // pred_check_branch
      %535 = sbr.rel (0) target = $region53
    $region52: #{tpu_custom_call.1} parent=1 // pred_region
      %536 = dma.done [#allocation4], 128
    $region53: #{tpu_custom_call.1} parent=1 // pred_fallthru
      _
    %537 = vsyncpa [#allocation3], 1
    %538 = vsyncpa [#allocation6], 1
    %539 = vsyncpa [#allocation9], 1
    %540 = vsyncpa [#allocation4], 1

</llo_original>
